<compile_context>
chip_gen: v6e
topology: v6e:2x2x1
jax: 0.10.0
libtpu: 0.0.40
codegen_flags: <defaults>
</compile_context>

<pallas_src>
import jax
import jax.numpy as jnp
from jax.experimental import pallas as pl
from jax.experimental.pallas import tpu as pltpu


def _mlp_kernel(x_ref, w_ref, o_ref):
    # Single fused matmul: logits = x_tile @ (W1^T @ W2^T).
    # f32 in, f32 accumulate, f32 out.
    o_ref[...] = jnp.dot(x_ref[...], w_ref[...],
                         preferred_element_type=jnp.float32)


def linear_mlp_forward(x_nchw, w1, w2, *, tm=None, force_pallas=False):
    """Forward pass of PyTorchLinearMLP.

    x_nchw: (N, C, H, W) float32 (PyTorch NCHW layout)
    w1:     (F, F) float32  -- fc1.weight (PyTorch layout)
    w2:     (K, F) float32  -- fc2.weight (PyTorch layout)
    returns (N, K) float32 logits.
    """
    n = x_nchw.shape[0]
    f = w1.shape[0]
    k = w2.shape[0]

    # Glue (plain JAX): flatten like torch.flatten(inputs, 1).
    x_flat = x_nchw.reshape(n, -1).astype(jnp.float32)

    # Algebraic fusion of the two bias-free Linear layers (weight-only,
    # computed once): logits = x @ W1^T @ W2^T = x @ W_comb.
    w_comb = (w1.T @ w2.T).astype(jnp.float32)          # (F, K)

    # Small-shape fast path: a Pallas launch is pure overhead at tiny sizes.
    if not force_pallas and n * f <= 4096:
        return x_flat @ w_comb

    # Row-tile size: multiple of 8 sublanes, large enough to amortize the
    # ~0.35 us per-grid-step overhead (target 32K rows), but small enough
    # relative to n that the grid has >= 2 steps (v7x megacore balance).
    if tm is None:
        tm_max = 32768
        tm = min(tm_max, max(8, pl.cdiv(pl.cdiv(n, 2), 8) * 8))
    tm = max(8, (tm // 8) * 8)

    grid = (pl.cdiv(n, tm),)

    cost = pl.CostEstimate(
        flops=2 * n * f * k,
        transcendentals=0,
        bytes_accessed=4 * (n * f + f * k + n * k),
    )

    out = pl.pallas_call(
        _mlp_kernel,
        out_shape=jax.ShapeDtypeStruct((n, k), jnp.float32),
        grid=grid,
        in_specs=[
            # activations: one row-tile per grid step (ragged last tile is
            # handled by Pallas masking; rows are independent).
            pl.BlockSpec((tm, f), lambda i: (i, 0)),
            # fused weight: constant index_map -> stays VMEM-resident (~96 B).
            pl.BlockSpec((f, k), lambda i: (0, 0)),
        ],
        # Unpadded output tile: true (tm, K) writeback, no lane padding.
        out_specs=pl.BlockSpec((tm, k), lambda i: (i, 0)),
        compiler_params=pltpu.CompilerParams(
            dimension_semantics=("parallel",),  # shards across v7x's 2 TCs
        ),
        cost_estimate=cost,
    )(x_flat, w_comb)

    return out


def make_params(image_width: int = 2, number_of_classes: int = 2):
    n_features = 3 * image_width ** 2
    # fc1.weight = identity
    w1 = jnp.eye(n_features, dtype=jnp.float32)
    # fc2.weight = ones * arange(K).flip().view(-1, 1)
    scale = jnp.flip(jnp.arange(number_of_classes, dtype=jnp.float32))[:, None]
    w2 = jnp.ones((number_of_classes, n_features), dtype=jnp.float32) * scale
    return w1, w2


if __name__ == "__main__":
    image_width = 2
    number_of_classes = 2
    w1, w2 = make_params(image_width, number_of_classes)

    key = jax.random.PRNGKey(0)

    # 1) Literal module test shape (N=2, C=3, H=W=2), forced through the
    #    Pallas path so the kernel itself is exercised.
    batch = 2
    x = jax.random.normal(key, (batch, 3, image_width, image_width),
                          dtype=jnp.float32)  # NCHW, matches PyTorch module
    out = linear_mlp_forward(x, w1, w2, force_pallas=True)
    out = jax.block_until_ready(out)
    ref = x.reshape(batch, -1) @ w1.T @ w2.T
    assert out.shape == (batch, number_of_classes), out.shape
    assert jnp.allclose(out, ref, atol=1e-5), (out, ref)

    # 2) A ragged, multi-step-grid batch to exercise tail masking and the
    #    2-step (megacore-balanced) grid.
    batch2 = 1000
    key2 = jax.random.PRNGKey(0)
    x2 = jax.random.normal(key2, (batch2, 3, image_width, image_width),
                           dtype=jnp.float32)
    out2 = linear_mlp_forward(x2, w1, w2, force_pallas=True)
    out2 = jax.block_until_ready(out2)
    ref2 = x2.reshape(batch2, -1) @ w1.T @ w2.T
    assert out2.shape == (batch2, number_of_classes), out2.shape
    assert jnp.allclose(out2, ref2, atol=1e-4), "ragged-batch mismatch"

    print("KERNEL_OK")
</pallas_src>

<mosaic_0001>
module attributes {stable_mosaic.version = 11 : i64} {
  func.func @_mlp_kernel(%arg0: i32, %arg1: memref<8x12xf32, #tpu.memory_space<vmem>>, %arg2: memref<12x2xf32, #tpu.memory_space<vmem>>, %arg3: memref<8x2xf32, #tpu.memory_space<vmem>>) attributes {dimension_semantics = [#tpu.dimension_semantics<parallel>], iteration_bounds = array<i64: 1>, scalar_prefetch = 0 : i64, scratch_operands = 0 : i64, tpu.core_type = #tpu.core_type<tc>, window_params = [{transform_indices = @transform_0, window_bounds = array<i64: 8, 12>}, {pipeline_mode = #tpu.pipeline_mode<synchronous>, transform_indices = @transform_1, window_bounds = array<i64: 12, 2>}, {transform_indices = @transform_2, window_bounds = array<i64: 8, 2>}]} {
    %c0 = arith.constant 0 : index
    %c0_0 = arith.constant 0 : index
    %0 = vector.load %arg1[%c0, %c0_0] : memref<8x12xf32, #tpu.memory_space<vmem>>, vector<8x12xf32>
    %c0_1 = arith.constant 0 : index
    %c0_2 = arith.constant 0 : index
    %1 = vector.load %arg2[%c0_1, %c0_2] : memref<12x2xf32, #tpu.memory_space<vmem>>, vector<12x2xf32>
    %cst = arith.constant dense<0.000000e+00> : vector<8x2xf32>
    %2 = tpu.matmul %0, %1, %cst {dimension_numbers = #tpu.dot_dimension_numbers<[1], [0], [0], [1], [0, 0, 1, 1], [], []>} : vector<8x12xf32>, vector<12x2xf32>, vector<8x2xf32> -> vector<8x2xf32>
    %c0_3 = arith.constant 0 : index
    %c0_4 = arith.constant 0 : index
    %3 = vector.load %arg3[%c0_3, %c0_4] : memref<8x2xf32, #tpu.memory_space<vmem>>, vector<8x2xf32>
    tpu.vector_store %arg3[%c0_3, %c0_4], %2 {strides = array<i32>} : memref<8x2xf32, #tpu.memory_space<vmem>>, vector<8x2xf32>,
    return
  }
  func.func @transform_0(%arg0: i32) -> (i32, i32) {
    %c0_i32 = arith.constant 0 : i32
    %c0_i32_0 = arith.constant 0 : i32
    return %arg0, %c0_i32 : i32, i32
  }
  func.func @transform_1(%arg0: i32) -> (i32, i32) {
    %c0_i32 = arith.constant 0 : i32
    %c0_i32_0 = arith.constant 0 : i32
    %c0_i32_1 = arith.constant 0 : i32
    return %c0_i32, %c0_i32_0 : i32, i32
  }
  func.func @transform_2(%arg0: i32) -> (i32, i32) {
    %c0_i32 = arith.constant 0 : i32
    %c0_i32_0 = arith.constant 0 : i32
    return %arg0, %c0_i32 : i32, i32
  }
}

</mosaic_0001>

<llo_original>
// kernel: tpu_custom_call.1
$region0: #{tpu_custom_call.1}
  #allocation0 [shape = 'u32[]', space=smem, size = 0x4, offset = 0x4, fixed_abs, tag = 'smem constant byte address 0x4 - core index']
  #allocation1 [shape = 'u32[144,128]{1,0:T(1,128)}', space=vmem, size = 0x12000, scoped, tag = 'internal scratch']
  %s0 = inlined_call_operand.vmem [shape: f32[2,12], index: 0, kind: input, shape index: {}]
  %s1 = inlined_call_operand.vmem [shape: f32[12,2], index: 1, kind: input, shape index: {}]
  %s2 = inlined_call_operand.hbm [shape: f32[2,2], index: 2, kind: output, shape index: {}]
  %s3 = sld [smem:[#allocation0]]
  $region18: #{tpu_custom_call.1} parent=0
    _
  %s5 = ssub.s32 1, %s3
  %s6 = scalar_select 0, %s5, %s3
  $region1: #{tpu_custom_call.1} parent=0
    #allocation2 [shape = 'u8[4096]{0}', space=vmem, size = 0x1000, scoped, tag = 'output window, operand 0, single buffered']
    #allocation3 [shape = 's32[1]{0}', space=sflag, size = 0x4, scoped, tag = 'scoped memory for tpu_custom_call.1']
    %7 = vsyncpa [#allocation3], 0
    // Predicated region
    $region2: #{tpu_custom_call.1} parent=1 // pred_check
      _
    $region3: #{tpu_custom_call.1} parent=1 // pred_check_branch
      %9 = sbr.rel (0) target = $region5
    $region4: #{tpu_custom_call.1} parent=1 // pred_region
      _
    $region5: #{tpu_custom_call.1} parent=1 // pred_fallthru
      _
    // Predicated region
    $region6: #{tpu_custom_call.1} parent=1 // pred_check
      _
    $region7: #{tpu_custom_call.1} parent=1 // pred_check_branch
      %11 = sbr.rel (0) target = $region9
    $region8: #{tpu_custom_call.1} parent=1 // pred_region
      _
    $region9: #{tpu_custom_call.1} parent=1 // pred_fallthru
      _
    %v12 = vld [vmem:[%s0] sm:$0xff]
    %v13 = vld [vmem:[%s1] sm:$0xff]
    %v14 = vld [vmem:[%s1 + $0x8] sm:$0xf]
    %vm15 = vcmask 97280
    %v17 = vsel %vm15, %v12, 0
    %vm19 = vcmask 1043456
    %v21 = vsel %vm19, %v14, 0
    %23 = vmatprep.subr.mxu0 0.0
    %24 = vmatpush1.msra.mxu0 0.0
    %25 = vmatprep.subr.mxu0 0.0
    %26 = vmatpush1.msra.mxu0 0.0
    %27 = vmatprep.subr.mxu0 0.0
    %28 = vmatpush1.msra.mxu0 0.0
    %29 = vmatprep.subr.mxu0 0.0
    %30 = vmatpush1.msra.mxu0 0.0
    %31 = vmatprep.subr.mxu0 0.0
    %32 = vmatpush1.msra.mxu0 0.0
    %33 = vmatprep.subr.mxu0 0.0
    %34 = vmatpush1.msra.mxu0 0.0
    %35 = vmatprep.subr.mxu0 0.0
    %36 = vmatpush1.msra.mxu0 0.0
    %37 = vmatprep.subr.mxu0 0.0
    %38 = vmatpush1.msra.mxu0 0.0
    %39 = vmatprep.subr.mxu0 0.0
    %40 = vmatpush1.msra.mxu0 0.0
    %41 = vmatprep.subr.mxu0 0.0
    %42 = vmatpush1.msra.mxu0 0.0
    %43 = vmatprep.subr.mxu0 0.0
    %44 = vmatpush1.msra.mxu0 0.0
    %45 = vmatprep.subr.mxu0 0.0
    %46 = vmatpush1.msra.mxu0 0.0
    %47 = vmatprep.subr.mxu0 0.0
    %48 = vmatpush1.msra.mxu0 0.0
    %49 = vmatprep.subr.mxu0 0.0
    %50 = vmatpush1.msra.mxu0 0.0
    %51 = vmatprep.subr.mxu0 0.0
    %52 = vmatpush1.msra.mxu0 %v21
    %53 = vmatprep.subr.mxu0 0.0
    %54 = vmatpush1.msra.mxu0 %v13
    %55 = vmatprep.subr.mxu0 0.0
    %56 = vmatpush2.msra.mxu0 0.0
    %57 = vmatprep.subr.mxu0 0.0
    %58 = vmatpush2.msra.mxu0 0.0
    %59 = vmatprep.subr.mxu0 0.0
    %60 = vmatpush2.msra.mxu0 0.0
    %61 = vmatprep.subr.mxu0 0.0
    %62 = vmatpush2.msra.mxu0 0.0
    %63 = vmatprep.subr.mxu0 0.0
    %64 = vmatpush2.msra.mxu0 0.0
    %65 = vmatprep.subr.mxu0 0.0
    %66 = vmatpush2.msra.mxu0 0.0
    %67 = vmatprep.subr.mxu0 0.0
    %68 = vmatpush2.msra.mxu0 0.0
    %69 = vmatprep.subr.mxu0 0.0
    %70 = vmatpush2.msra.mxu0 0.0
    %71 = vmatprep.subr.mxu0 0.0
    %72 = vmatpush2.msra.mxu0 0.0
    %73 = vmatprep.subr.mxu0 0.0
    %74 = vmatpush2.msra.mxu0 0.0
    %75 = vmatprep.subr.mxu0 0.0
    %76 = vmatpush2.msra.mxu0 0.0
    %77 = vmatprep.subr.mxu0 0.0
    %78 = vmatpush2.msra.mxu0 0.0
    %79 = vmatprep.subr.mxu0 0.0
    %80 = vmatpush2.msra.mxu0 0.0
    %81 = vmatprep.subr.mxu0 0.0
    %82 = vmatpush2.msra.mxu0 0.0
    %83 = vmatprep.subr.mxu0 0.0
    %84 = vmatpush2.msra.mxu0 0.0
    %85 = vmatprep.subr.mxu0 0.0
    %86 = vmatpush2.msra.mxu0 0.0
    %87 = vmatprep.mubr.f32.mxu0 0.0
    %88 = vmatmul.mubr.f32.gmra.mxu0 %v17
    %v89 = vpop.f32.mrf.mxu0
    %v90 = vadd.f32 0.0, %v89
    %v91 = vpop.f32.mrf.mxu0
    %92 = vdwg.mxu0
    %vm93 = vcmask 15360
    %94 = vst.msk [vmem:[#allocation2] sm:$0xff] %vm93, %v90
    // Predicated region
    $region10: #{tpu_custom_call.1} parent=1 // pred_check
      _
    $region11: #{tpu_custom_call.1} parent=1 // pred_check_branch
      %96 = sbr.rel (0) target = $region13
    $region12: #{tpu_custom_call.1} parent=1 // pred_region
      %s98 = ssub.s32 128, 32
      %99 = vsyncadd [#allocation3], %s98
      %s100 = sshll.u32 [#allocation2], 4
      %s101 = int_to_ptr.vmem [resolvable:$true] %s100
      %106 = dma.vmem_to_hbm [thread:$0]  %s101, 32, %s2, [#allocation3], 32, 32, 2
    $region13: #{tpu_custom_call.1} parent=1 // pred_fallthru
      _
    // Predicated region
    $region14: #{tpu_custom_call.1} parent=1 // pred_check
      _
    $region15: #{tpu_custom_call.1} parent=1 // pred_check_branch
      %108 = sbr.rel (0) target = $region17
    $region16: #{tpu_custom_call.1} parent=1 // pred_region
      %109 = dma.done [#allocation3], 128
    $region17: #{tpu_custom_call.1} parent=1 // pred_fallthru
      _
    %110 = vsyncpa [#allocation3], 1

</llo_original>
